<compile_context>
chip_gen: v6e
topology: v6e:2x2x1
jax: 0.10.0
libtpu: 0.0.40
codegen_flags: <defaults>
</compile_context>

<pallas_src>
import functools

import jax
import jax.numpy as jnp
from jax.experimental import pallas as pl
from jax.experimental.pallas import tpu as pltpu

LANE = 128
TARGET_BLOCK_BYTES = 4 << 20   # ~4 MiB per block
MIN_BLOCK_BYTES = 1 << 20      # don't shrink blocks below ~1 MiB to add steps
VMEM_LIMIT_BYTES = 32 << 20    # 2 arrays x 2 buffers x 4 MiB = 16 MiB << 32 MiB


def _round_up(x: int, m: int) -> int:
    return ((x + m - 1) // m) * m


def _sigmoid_kernel(g_ref, o_ref, *, shift: float):
    # Single f32 upcast (no-op for f32 inputs; required for v5e's EUP).
    x = g_ref[...].astype(jnp.float32)
    # sigmoid(z) == 0.5 * (1 + tanh(z / 2)): one EUP transcendental per
    # element (vs exp + reciprocal); the mul/adds ride the VPU for free.
    z = 0.5 * (shift - x)
    o_ref[...] = (0.5 * (1.0 + jnp.tanh(z))).astype(o_ref.dtype)


def _pick_cols(n: int, sub: int) -> int:
    """Widest lane-dense column count (multiple of 128, <= 4096) dividing n.

    Prefers a width that still leaves at least `sub` rows (full sublane
    packing and room to split the grid); falls back to the widest divisor.
    `n` is always a positive multiple of 128 here, so this never returns 0.
    """
    widest = 0
    for w in range(32, 0, -1):
        c = LANE * w
        if n % c == 0:
            if widest == 0:
                widest = c
            if n // c >= sub:
                return c
    return widest


def _launch(slab: jax.Array, shift: float, sub: int) -> jax.Array:
    rows, cols = slab.shape
    dtype = slab.dtype
    itemsize = jnp.dtype(dtype).itemsize
    bytes_per_row = cols * itemsize

    tm_cap = max(sub, (TARGET_BLOCK_BYTES // bytes_per_row) // sub * sub)

    if rows < 2 * sub:
        tm = rows                      # single tiny block; nothing to split
    else:
        # Never run a 1-step grid: >= 2 steps so DMA-in / compute / DMA-out
        # overlap; >= 4 steps (even count, feeding both v7x TensorCores
        # without a 1-block imbalance) when rows allow it without shrinking
        # blocks below ~1 MiB (keeps the ~0.35 us per-step overhead small).
        min_rows = max(sub, (MIN_BLOCK_BYTES // bytes_per_row) // sub * sub)
        want = 4 if rows >= 4 * min_rows else 2
        steps = max(want, pl.cdiv(rows, tm_cap))
        if steps % 2:
            steps += 1
        tm = max(sub, min(tm_cap, _round_up(pl.cdiv(rows, steps), sub)))
    grid = (pl.cdiv(rows, tm),)

    n = rows * cols
    cost = pl.CostEstimate(
        flops=4 * n,
        transcendentals=n,
        bytes_accessed=2 * n * itemsize,
    )

    return pl.pallas_call(
        functools.partial(_sigmoid_kernel, shift=float(shift)),
        out_shape=jax.ShapeDtypeStruct((rows, cols), dtype),
        grid_spec=pl.GridSpec(
            grid=grid,
            in_specs=[pl.BlockSpec((tm, cols), lambda i: (i, 0))],
            out_specs=pl.BlockSpec((tm, cols), lambda i: (i, 0)),
        ),
        compiler_params=pltpu.CompilerParams(
            dimension_semantics=("parallel",),
            vmem_limit_bytes=VMEM_LIMIT_BYTES,
        ),
        cost_estimate=cost,
    )(slab)


def sigmoid_weighting(gamma: jax.Array, shift: float = 2.0) -> jax.Array:
    """Pallas implementation of SigmoidWeighting.forward: sigmoid(shift - gamma)."""
    # TODO(synk): if `shift` ever becomes a traced/learnable scalar, pass it
    # via a (1, 1) SMEM ref instead of baking it as a closure constant.
    orig_shape = gamma.shape
    dtype = gamma.dtype
    itemsize = jnp.dtype(dtype).itemsize
    sub = max(8, 32 // max(1, itemsize))   # packed sublane tile: 8 / 16 / 32

    flat = gamma.reshape(-1)               # metadata-only reshape (free)
    n = int(flat.shape[0])
    n_main = (n // LANE) * LANE            # 128-aligned prefix -> kernel

    def _tail_sigmoid(t):
        z = 0.5 * (float(shift) - t.astype(jnp.float32))
        return (0.5 * (1.0 + jnp.tanh(z))).astype(dtype)

    if n_main == 0:
        # Fewer than 128 elements: a kernel launch buys nothing.
        return _tail_sigmoid(flat).reshape(orig_shape)

    head = flat if n_main == n else flat[:n_main]
    cols = _pick_cols(n_main, sub)
    rows = n_main // cols
    head_out = _launch(head.reshape(rows, cols), shift, sub)

    if n_main == n:
        return head_out.reshape(orig_shape)

    # Ragged tail (< 128 elements): plain jnp + one concat; no full-array
    # pad / slice HBM round trips.
    tail_out = _tail_sigmoid(flat[n_main:])
    return jnp.concatenate([head_out.reshape(-1), tail_out]).reshape(orig_shape)


if __name__ == "__main__":
    key = jax.random.PRNGKey(0)
    k0, k1, k2 = jax.random.split(key, 3)

    # Aligned path: image-like gamma, n = 2048 (multiple of 128).
    gamma = jax.random.normal(k0, (2, 4, 16, 16), dtype=jnp.float32) * 3.0
    out = jax.block_until_ready(sigmoid_weighting(gamma, shift=2.0))
    ref = jax.nn.sigmoid(-gamma + 2.0)
    assert out.shape == gamma.shape
    assert jnp.allclose(out, ref, atol=1e-6), "mismatch vs reference (aligned)"

    # Ragged path: 128-aligned prefix through the kernel + jnp tail.
    gamma_ragged = jax.random.normal(k1, (5, 7, 11), dtype=jnp.float32) * 2.0
    out_r = jax.block_until_ready(sigmoid_weighting(gamma_ragged, shift=2.0))
    ref_r = jax.nn.sigmoid(-gamma_ragged + 2.0)
    assert out_r.shape == gamma_ragged.shape
    assert jnp.allclose(out_r, ref_r, atol=1e-6), "mismatch vs reference (ragged)"

    # Tiny (< 128 elements) fallback path.
    gamma_tiny = jax.random.normal(k2, (3, 5), dtype=jnp.float32)
    out_t = jax.block_until_ready(sigmoid_weighting(gamma_tiny, shift=2.0))
    assert jnp.allclose(out_t, jax.nn.sigmoid(-gamma_tiny + 2.0), atol=1e-6), \
        "mismatch vs reference (tiny)"

    print("KERNEL_OK")
</pallas_src>

<mosaic_0001>
module attributes {stable_mosaic.version = 11 : i64} {
  func.func @_sigmoid_kernel(%arg0: i32, %arg1: memref<8x256xf32, #tpu.memory_space<vmem>>, %arg2: memref<8x256xf32, #tpu.memory_space<vmem>>) attributes {dimension_semantics = [#tpu.dimension_semantics<parallel>], iteration_bounds = array<i64: 1>, scalar_prefetch = 0 : i64, scratch_operands = 0 : i64, tpu.core_type = #tpu.core_type<tc>, window_params = [{transform_indices = @transform_0, window_bounds = array<i64: 8, 256>}, {transform_indices = @transform_1, window_bounds = array<i64: 8, 256>}]} {
    %c0 = arith.constant 0 : index
    %c0_0 = arith.constant 0 : index
    %0 = vector.load %arg1[%c0, %c0_0] : memref<8x256xf32, #tpu.memory_space<vmem>>, vector<8x256xf32>
    %cst = arith.constant 2.000000e+00 : f32
    %1 = vector.broadcast %cst : f32 to vector<8x256xf32>
    %2 = arith.subf %1, %0 : vector<8x256xf32>
    %cst_1 = arith.constant 5.000000e-01 : f32
    %3 = vector.broadcast %cst_1 : f32 to vector<8x256xf32>
    %4 = arith.mulf %3, %2 : vector<8x256xf32>
    %5 = math.tanh %4 : vector<8x256xf32>
    %cst_2 = arith.constant 1.000000e+00 : f32
    %6 = vector.broadcast %cst_2 : f32 to vector<8x256xf32>
    %7 = arith.addf %6, %5 : vector<8x256xf32>
    %cst_3 = arith.constant 5.000000e-01 : f32
    %8 = vector.broadcast %cst_3 : f32 to vector<8x256xf32>
    %9 = arith.mulf %8, %7 : vector<8x256xf32>
    %c0_4 = arith.constant 0 : index
    %c0_5 = arith.constant 0 : index
    %10 = vector.load %arg2[%c0_4, %c0_5] : memref<8x256xf32, #tpu.memory_space<vmem>>, vector<8x256xf32>
    tpu.vector_store %arg2[%c0_4, %c0_5], %9 {strides = array<i32>} : memref<8x256xf32, #tpu.memory_space<vmem>>, vector<8x256xf32>,
    return
  }
  func.func @transform_0(%arg0: i32) -> (i32, i32) {
    %c0_i32 = arith.constant 0 : i32
    %c0_i32_0 = arith.constant 0 : i32
    return %arg0, %c0_i32 : i32, i32
  }
  func.func @transform_1(%arg0: i32) -> (i32, i32) {
    %c0_i32 = arith.constant 0 : i32
    %c0_i32_0 = arith.constant 0 : i32
    return %arg0, %c0_i32 : i32, i32
  }
}

</mosaic_0001>

<llo_original>
// kernel: tpu_custom_call.1
$region0: #{tpu_custom_call.1}
  #allocation0 [shape = 'u32[]', space=smem, size = 0x4, offset = 0x4, fixed_abs, tag = 'smem constant byte address 0x4 - core index']
  #allocation1 [shape = 'u32[144,128]{1,0:T(1,128)}', space=vmem, size = 0x12000, scoped, tag = 'internal scratch']
  %s0 = inlined_call_operand.hbm [shape: f32[8,256], index: 0, kind: input, shape index: {}]
  %s1 = inlined_call_operand.hbm [shape: f32[8,256], index: 1, kind: output, shape index: {}]
  %s2 = sld [smem:[#allocation0]]
  $region18: #{tpu_custom_call.1} parent=0
    _
  %s4 = ssub.s32 1, %s2
  %s5 = scalar_select 0, %s4, %s2
  $region1: #{tpu_custom_call.1} parent=0
    #allocation2 [shape = 'u8[8192]{0}', space=vmem, size = 0x2000, scoped, tag = 'input window, operand 0, single buffered']
    #allocation3 [shape = 's32[1]{0}', space=sflag, size = 0x4, scoped, tag = 'scoped memory for tpu_custom_call.1']
    #allocation4 [shape = 's32[1]{0}', space=sflag, size = 0x4, scoped, tag = 'scoped memory for tpu_custom_call.1']
    #allocation5 [shape = 'u8[8192]{0}', space=vmem, size = 0x2000, scoped, tag = 'output window, operand 0, single buffered']
    %6 = vsyncpa [#allocation3], 0
    %7 = vsyncpa [#allocation4], 0
    // Predicated region
    $region2: #{tpu_custom_call.1} parent=1 // pred_check
      _
    $region3: #{tpu_custom_call.1} parent=1 // pred_check_branch
      %9 = sbr.rel (0) target = $region5
    $region4: #{tpu_custom_call.1} parent=1 // pred_region
      %s11 = ssub.s32 256, 256
      %12 = vsyncadd [#allocation3], %s11
      %s14 = sshll.u32 [#allocation2], 4
      %s15 = int_to_ptr.vmem [resolvable:$true] %s14
      %17 = dma.hbm_to_vmem [thread:$0]  %s0, 256, %s15, [#allocation3]
    $region5: #{tpu_custom_call.1} parent=1 // pred_fallthru
      _
    // Predicated region
    $region6: #{tpu_custom_call.1} parent=1 // pred_check
      _
    $region7: #{tpu_custom_call.1} parent=1 // pred_check_branch
      %19 = sbr.rel (0) target = $region9
    $region8: #{tpu_custom_call.1} parent=1 // pred_region
      %20 = dma.done [#allocation3], 256
    $region9: #{tpu_custom_call.1} parent=1 // pred_fallthru
      _
    %v21 = vld [vmem:[#allocation2] sm:$0xff]
    %v22 = vld [vmem:[#allocation2 + $0x8] sm:$0xff]
    %v23 = vsub.f32 2.0, %v21
    %v24 = vsub.f32 2.0, %v22
    %v25 = vmul.f32 %v23, 0.5
    %v26 = vmul.f32 %v24, 0.5
    %v27 = vtanh.pop %v25
    %v28 = vtanh.pop %v26
    %v29 = vadd.f32 %v27, 1.0
    %v30 = vadd.f32 %v28, 1.0
    %v31 = vmul.f32 %v29, 0.5
    %v32 = vmul.f32 %v30, 0.5
    %33 = vst [vmem:[#allocation5] sm:$0xff] %v31
    %34 = vst [vmem:[#allocation5 + $0x8] sm:$0xff] %v32
    // Predicated region
    $region10: #{tpu_custom_call.1} parent=1 // pred_check
      _
    $region11: #{tpu_custom_call.1} parent=1 // pred_check_branch
      %36 = sbr.rel (0) target = $region13
    $region12: #{tpu_custom_call.1} parent=1 // pred_region
      %s38 = ssub.s32 256, 256
      %39 = vsyncadd [#allocation4], %s38
      %s41 = sshll.u32 [#allocation5], 4
      %s42 = int_to_ptr.vmem [resolvable:$true] %s41
      %44 = dma.vmem_to_hbm [thread:$0]  %s42, 256, %s1, [#allocation4]
    $region13: #{tpu_custom_call.1} parent=1 // pred_fallthru
      _
    // Predicated region
    $region14: #{tpu_custom_call.1} parent=1 // pred_check
      _
    $region15: #{tpu_custom_call.1} parent=1 // pred_check_branch
      %46 = sbr.rel (0) target = $region17
    $region16: #{tpu_custom_call.1} parent=1 // pred_region
      %47 = dma.done [#allocation4], 256
    $region17: #{tpu_custom_call.1} parent=1 // pred_fallthru
      _
    %48 = vsyncpa [#allocation3], 1
    %49 = vsyncpa [#allocation4], 1

</llo_original>
